<compile_context>
chip_gen: v5e
topology: v5e:2x2
jax: 0.10.0
libtpu: 0.0.40
codegen_flags: <defaults>
</compile_context>

<pallas_src>
import jax
import jax.numpy as jnp
from jax.experimental import pallas as pl
from jax.experimental.pallas import tpu as pltpu

# ---- synthetic region neuron counts (stand-in for cnt(...)) ----------------
CNT = {
    "V1": 32,
    "V2": 32,
    "V3": 16,
    "V3A": 16,
    "V3B": 16,
    "V4": 32,
    "LatOcc": 32,
}
V3X = CNT["V3"] + CNT["V3A"] + CNT["V3B"]                       # 48
OUT_DIM = CNT["V1"] + CNT["V2"] + V3X + CNT["V4"] + CNT["LatOcc"]  # 176


# ---------------------------------------------------------------------------
# Kernel
# ---------------------------------------------------------------------------
def _brain_kernel(
    visual_ref,               # (tile_b, in)  bf16
    w_vis_ref, b_vis_ref,     # fused [V1 | LatOcc]   : (in, 64) bf16, (1, 64) f32
    w_v2_ref, b_v2_ref,       #                         (32, 32) bf16, (1, 32) f32
    w_v3x_ref, b_v3x_ref,     # fused [V3|V3A|V3B]    : (32, 48) bf16, (1, 48) f32
    w_v4_ref, b_v4_ref,       #                         (48, 32) bf16, (1, 32) f32
    out_ref,                  # (tile_b, 176)  out_dtype
):
    """4 fused matmuls (bf16 MXU, f32 acc) + ReLU + one lane-dense store."""

    def layer(x_bf16, w_ref, b_ref):
        y = jnp.dot(x_bf16, w_ref[...], preferred_element_type=jnp.float32)
        return jnp.maximum(y + b_ref[...], 0.0)       # bias + ReLU in f32 (VPU)

    visual = visual_ref[...]                          # already bf16, no cast copy

    # Fused V1 + LatOcc: both read `visual`, same K -> free MXU width.
    y_vis = layer(visual, w_vis_ref, b_vis_ref)       # (tb, 64) f32
    v1 = y_vis[:, :CNT["V1"]]
    latocc = y_vis[:, CNT["V1"]:]

    v2 = layer(v1.astype(jnp.bfloat16), w_v2_ref, b_v2_ref)       # (tb, 32)
    v3x = layer(v2.astype(jnp.bfloat16), w_v3x_ref, b_v3x_ref)    # (tb, 48)
    v4 = layer(v3x.astype(jnp.bfloat16), w_v4_ref, b_v4_ref)      # (tb, 32)

    # One assembly of the 176-wide row (concat goes to the XLU slot) followed
    # by a single store -> avoids masked vst.msk partial stores at cols
    # 112..175 that straddle the 128-lane vreg boundary.
    row = jnp.concatenate([v1, v2, v3x, v4, latocc], axis=-1)     # (tb, 176)
    out_ref[...] = row.astype(out_ref.dtype)


# ---------------------------------------------------------------------------
# Tiling / VMEM heuristics
# ---------------------------------------------------------------------------
def _vmem_capacity_bytes():
    """Physical VMEM of the attached TPU; conservative 64 MiB fallback (v7x)."""
    try:
        info = pltpu.get_tpu_info()
        cap = getattr(info, "vmem_capacity_bytes", None)
        if cap:
            return int(cap)
    except Exception:
        pass
    return 64 * 1024 * 1024


def _round_down8(x):
    return max(8, (x // 8) * 8)


def _round_up8(x):
    return ((x + 7) // 8) * 8


def _pick_tile_b(B, in_features, out_bytes, budget_bytes):
    """Largest batch tile fitting the VMEM budget; >=2 grid steps when B>=16."""
    # Per-row VMEM cost inside the pipeline:
    #   visual block (bf16, double-buffered) + output block (double-buffered)
    #   + f32 intermediates (y_vis/v2/v3x/v4/row).
    per_row = (2 * in_features * 2
               + 2 * OUT_DIM * out_bytes
               + (64 + 32 + 48 + 32 + OUT_DIM) * 4)
    # Fixed cost: weights/biases (constant blocks, still double-buffered) + slack.
    fixed = 2 * (in_features * 64 * 2)                       # w_vis
    fixed += 2 * (32 * 32 + 32 * 48 + 48 * 32) * 2           # small weights
    fixed += 2 * (64 + 32 + 48 + 32) * 4                     # biases
    fixed += 2 * 1024 * 1024                                 # compiler scratch slack
    rows = max(8, (budget_bytes - fixed) // per_row)
    tile = _round_down8(min(int(rows), 4096))                # >=2K rows amortize ~0.35us/step
    if B >= 16:
        # Keep at least 2 grid steps so megacore / v7x's 2nd TC gets work.
        tile = min(tile, _round_up8(pl.cdiv(B, 2)))
    if tile >= B:
        return B
    return tile


# ---------------------------------------------------------------------------
# Wrapper
# ---------------------------------------------------------------------------
def brain_emulator_forward(visual, params, *, tile_b=None, out_dtype=jnp.bfloat16):
    """params: dict of (W, b) per region. W: [in, out], b: [1, out] (float32).

    `out_dtype` defaults to bf16 (HBM-bound kernel: halves the writeback
    stream). Pass jnp.float32 for the exact torch output dtype.
    """
    B, in_features = visual.shape
    bf16, f32 = jnp.bfloat16, jnp.float32

    # Kernel is HBM-bandwidth bound; feed the dominant stream (visual) in bf16.
    # TODO(synk): produce `visual` in bf16 upstream to also drop this cast op.
    visual_bf16 = visual.astype(bf16)

    vmem_cap = _vmem_capacity_bytes()
    vmem_limit = min(int(vmem_cap * 0.875), 128 * 1024 * 1024)   # leave headroom
    out_bytes = jnp.dtype(out_dtype).itemsize
    if tile_b is None:
        tile_b = _pick_tile_b(B, in_features, out_bytes, int(vmem_limit * 0.75))
    assert tile_b == B or tile_b % 8 == 0, "tile_b must be a multiple of 8 (or == B)"

    w_v1, b_v1 = params["V1"]
    w_v2, b_v2 = params["V2"]
    w_v3, b_v3 = params["V3"]
    w_v3a, b_v3a = params["V3A"]
    w_v3b, b_v3b = params["V3B"]
    w_v4, b_v4 = params["V4"]
    w_lo, b_lo = params["LatOcc"]

    # ---- host-side weight packing (done once, outside the kernel) ----------
    w_vis = jnp.concatenate([w_v1, w_lo], axis=1).astype(bf16)          # (in, 64)
    b_vis = jnp.concatenate([b_v1, b_lo], axis=1).astype(f32)           # (1, 64)
    w_v3x = jnp.concatenate([w_v3, w_v3a, w_v3b], axis=1).astype(bf16)  # (32, 48)
    b_v3x = jnp.concatenate([b_v3, b_v3a, b_v3b], axis=1).astype(f32)   # (1, 48)
    w_v2b, b_v2f = w_v2.astype(bf16), b_v2.astype(f32)
    w_v4b, b_v4f = w_v4.astype(bf16), b_v4.astype(f32)

    grid = (pl.cdiv(B, tile_b),)

    def const_spec(arr):
        # Weights/biases: full array in VMEM, same block every grid step.
        # TODO(synk): pipeline_mode=pl.Buffered(1) would drop the redundant 2nd
        #             buffer for these constant-index blocks (w_vis costs
        #             in*64*2 B per buffer) -- extra headroom mainly for v7x.
        return pl.BlockSpec(arr.shape, lambda i: (0, 0))

    weight_args = [w_vis, b_vis, w_v2b, b_v2f, w_v3x, b_v3x, w_v4b, b_v4f]

    in_specs = [pl.BlockSpec((tile_b, in_features), lambda i: (i, 0))]
    in_specs += [const_spec(a) for a in weight_args]

    out = pl.pallas_call(
        _brain_kernel,
        out_shape=jax.ShapeDtypeStruct((B, OUT_DIM), out_dtype),
        grid=grid,
        in_specs=in_specs,
        out_specs=pl.BlockSpec((tile_b, OUT_DIM), lambda i: (i, 0)),
        compiler_params=pltpu.CompilerParams(
            dimension_semantics=("parallel",),     # megacore / v7x 2nd TC
            vmem_limit_bytes=vmem_limit),
    )(visual_bf16, *weight_args)
    return out


# ---------------------------------------------------------------------------
# Parameter init + pure-JAX reference
# ---------------------------------------------------------------------------
def init_params(key, in_features, bias=True):
    sizes = {
        "V1": (in_features, CNT["V1"]),
        "V2": (CNT["V1"], CNT["V2"]),
        "V3": (CNT["V2"], CNT["V3"]),
        "V3A": (CNT["V2"], CNT["V3A"]),
        "V3B": (CNT["V2"], CNT["V3B"]),
        "V4": (V3X, CNT["V4"]),
        "LatOcc": (in_features, CNT["LatOcc"]),
    }
    params = {}
    for name, (n_in, n_out) in sizes.items():
        key, kw, kb = jax.random.split(key, 3)
        scale = 1.0 / jnp.sqrt(jnp.float32(n_in))
        w = jax.random.uniform(kw, (n_in, n_out), jnp.float32, -scale, scale)
        if bias:
            b = jax.random.uniform(kb, (1, n_out), jnp.float32, -scale, scale)
        else:
            b = jnp.zeros((1, n_out), jnp.float32)
        params[name] = (w, b)
    return params


def reference_forward(visual, params):
    """Pure-JAX reference with the same numerics (bf16 MXU inputs, f32 acc)."""
    def layer(x, wb):
        w, b = wb
        y = jnp.dot(x.astype(jnp.bfloat16), w.astype(jnp.bfloat16),
                    preferred_element_type=jnp.float32)
        return jnp.maximum(y + b.astype(jnp.float32), 0.0)

    v1 = layer(visual, params["V1"])
    v2 = layer(v1, params["V2"])
    v3 = layer(v2, params["V3"])
    v3a = layer(v2, params["V3A"])
    v3b = layer(v2, params["V3B"])
    v3x = jnp.concatenate([v3, v3a, v3b], axis=1)
    v4 = layer(v3x, params["V4"])
    latocc = layer(visual, params["LatOcc"])
    return jnp.concatenate([v1, v2, v3x, v4, latocc], axis=1)


if __name__ == "__main__":
    B = 32
    IN_FEATURES = 64

    key = jax.random.PRNGKey(0)
    key, kx = jax.random.split(key)
    visual = jax.random.normal(kx, (B, IN_FEATURES), jnp.float32)
    params = init_params(key, IN_FEATURES, bias=True)

    ref = reference_forward(visual, params)

    # f32-output path: tight check (only accumulation-order noise vs. reference).
    spike_f32 = brain_emulator_forward(visual, params, out_dtype=jnp.float32)
    spike_f32 = jax.block_until_ready(spike_f32)
    assert spike_f32.shape == (B, OUT_DIM)
    assert jnp.allclose(spike_f32, ref, atol=2e-3, rtol=2e-3), (
        float(jnp.max(jnp.abs(spike_f32 - ref))))

    # Default (bf16-output) perf path: auto tile_b, loose check for bf16 rounding.
    spike_bf16 = brain_emulator_forward(visual, params)
    spike_bf16 = jax.block_until_ready(spike_bf16)
    assert spike_bf16.shape == (B, OUT_DIM)
    assert spike_bf16.dtype == jnp.bfloat16
    assert jnp.allclose(spike_bf16.astype(jnp.float32), ref, atol=3e-2, rtol=3e-2), (
        float(jnp.max(jnp.abs(spike_bf16.astype(jnp.float32) - ref))))

    print("KERNEL_OK")
</pallas_src>

<mosaic_0001>
module attributes {stable_mosaic.version = 11 : i64} {
  func.func @_brain_kernel(%arg0: i32, %arg1: memref<16x64xbf16, #tpu.memory_space<vmem>>, %arg2: memref<64x64xbf16, #tpu.memory_space<vmem>>, %arg3: memref<1x64xf32, #tpu.memory_space<vmem>>, %arg4: memref<32x32xbf16, #tpu.memory_space<vmem>>, %arg5: memref<1x32xf32, #tpu.memory_space<vmem>>, %arg6: memref<32x48xbf16, #tpu.memory_space<vmem>>, %arg7: memref<1x48xf32, #tpu.memory_space<vmem>>, %arg8: memref<48x32xbf16, #tpu.memory_space<vmem>>, %arg9: memref<1x32xf32, #tpu.memory_space<vmem>>, %arg10: memref<16x176xf32, #tpu.memory_space<vmem>>) attributes {dimension_semantics = [#tpu.dimension_semantics<parallel>], iteration_bounds = array<i64: 2>, scalar_prefetch = 0 : i64, scratch_operands = 0 : i64, tpu.core_type = #tpu.core_type<tc>, window_params = [{transform_indices = @transform_0, window_bounds = array<i64: 16, 64>}, {pipeline_mode = #tpu.pipeline_mode<synchronous>, transform_indices = @transform_1, window_bounds = array<i64: 64, 64>}, {pipeline_mode = #tpu.pipeline_mode<synchronous>, transform_indices = @transform_2, window_bounds = array<i64: 1, 64>}, {pipeline_mode = #tpu.pipeline_mode<synchronous>, transform_indices = @transform_3, window_bounds = array<i64: 32, 32>}, {pipeline_mode = #tpu.pipeline_mode<synchronous>, transform_indices = @transform_4, window_bounds = array<i64: 1, 32>}, {pipeline_mode = #tpu.pipeline_mode<synchronous>, transform_indices = @transform_5, window_bounds = array<i64: 32, 48>}, {pipeline_mode = #tpu.pipeline_mode<synchronous>, transform_indices = @transform_6, window_bounds = array<i64: 1, 48>}, {pipeline_mode = #tpu.pipeline_mode<synchronous>, transform_indices = @transform_7, window_bounds = array<i64: 48, 32>}, {pipeline_mode = #tpu.pipeline_mode<synchronous>, transform_indices = @transform_8, window_bounds = array<i64: 1, 32>}, {transform_indices = @transform_9, window_bounds = array<i64: 16, 176>}]} {
    %c0 = arith.constant 0 : index
    %c0_0 = arith.constant 0 : index
    %0 = vector.load %arg1[%c0, %c0_0] : memref<16x64xbf16, #tpu.memory_space<vmem>>, vector<16x64xbf16>
    %c0_1 = arith.constant 0 : index
    %c0_2 = arith.constant 0 : index
    %1 = vector.load %arg2[%c0_1, %c0_2] : memref<64x64xbf16, #tpu.memory_space<vmem>>, vector<64x64xbf16>
    %cst = arith.constant dense<0.000000e+00> : vector<16x64xf32>
    %2 = tpu.matmul %0, %1, %cst {dimension_numbers = #tpu.dot_dimension_numbers<[1], [0], [0], [1], [0, 0, 1, 1], [], []>} : vector<16x64xbf16>, vector<64x64xbf16>, vector<16x64xf32> -> vector<16x64xf32>
    %c0_3 = arith.constant 0 : index
    %c0_4 = arith.constant 0 : index
    %3 = vector.load %arg3[%c0_3, %c0_4] : memref<1x64xf32, #tpu.memory_space<vmem>>, vector<1x64xf32>
    %4 = vector.broadcast %3 : vector<1x64xf32> to vector<16x64xf32>
    %5 = arith.addf %2, %4 : vector<16x64xf32>
    %cst_5 = arith.constant 0.000000e+00 : f32
    %6 = vector.broadcast %cst_5 : f32 to vector<16x64xf32>
    %7 = arith.maximumf %5, %6 : vector<16x64xf32>
    %8 = vector.extract_strided_slice %7 {offsets = [0, 0], sizes = [16, 32], strides = [1, 1]} : vector<16x64xf32> to vector<16x32xf32>
    %9 = vector.extract_strided_slice %7 {offsets = [0, 32], sizes = [16, 32], strides = [1, 1]} : vector<16x64xf32> to vector<16x32xf32>
    %10 = arith.truncf %8 : vector<16x32xf32> to vector<16x32xbf16>
    %c0_6 = arith.constant 0 : index
    %c0_7 = arith.constant 0 : index
    %11 = vector.load %arg4[%c0_6, %c0_7] : memref<32x32xbf16, #tpu.memory_space<vmem>>, vector<32x32xbf16>
    %cst_8 = arith.constant dense<0.000000e+00> : vector<16x32xf32>
    %12 = tpu.matmul %10, %11, %cst_8 {dimension_numbers = #tpu.dot_dimension_numbers<[1], [0], [0], [1], [0, 0, 1, 1], [], []>} : vector<16x32xbf16>, vector<32x32xbf16>, vector<16x32xf32> -> vector<16x32xf32>
    %c0_9 = arith.constant 0 : index
    %c0_10 = arith.constant 0 : index
    %13 = vector.load %arg5[%c0_9, %c0_10] : memref<1x32xf32, #tpu.memory_space<vmem>>, vector<1x32xf32>
    %14 = vector.broadcast %13 : vector<1x32xf32> to vector<16x32xf32>
    %15 = arith.addf %12, %14 : vector<16x32xf32>
    %cst_11 = arith.constant 0.000000e+00 : f32
    %16 = vector.broadcast %cst_11 : f32 to vector<16x32xf32>
    %17 = arith.maximumf %15, %16 : vector<16x32xf32>
    %18 = arith.truncf %17 : vector<16x32xf32> to vector<16x32xbf16>
    %c0_12 = arith.constant 0 : index
    %c0_13 = arith.constant 0 : index
    %19 = vector.load %arg6[%c0_12, %c0_13] : memref<32x48xbf16, #tpu.memory_space<vmem>>, vector<32x48xbf16>
    %cst_14 = arith.constant dense<0.000000e+00> : vector<16x48xf32>
    %20 = tpu.matmul %18, %19, %cst_14 {dimension_numbers = #tpu.dot_dimension_numbers<[1], [0], [0], [1], [0, 0, 1, 1], [], []>} : vector<16x32xbf16>, vector<32x48xbf16>, vector<16x48xf32> -> vector<16x48xf32>
    %c0_15 = arith.constant 0 : index
    %c0_16 = arith.constant 0 : index
    %21 = vector.load %arg7[%c0_15, %c0_16] : memref<1x48xf32, #tpu.memory_space<vmem>>, vector<1x48xf32>
    %22 = vector.broadcast %21 : vector<1x48xf32> to vector<16x48xf32>
    %23 = arith.addf %20, %22 : vector<16x48xf32>
    %cst_17 = arith.constant 0.000000e+00 : f32
    %24 = vector.broadcast %cst_17 : f32 to vector<16x48xf32>
    %25 = arith.maximumf %23, %24 : vector<16x48xf32>
    %26 = arith.truncf %25 : vector<16x48xf32> to vector<16x48xbf16>
    %c0_18 = arith.constant 0 : index
    %c0_19 = arith.constant 0 : index
    %27 = vector.load %arg8[%c0_18, %c0_19] : memref<48x32xbf16, #tpu.memory_space<vmem>>, vector<48x32xbf16>
    %cst_20 = arith.constant dense<0.000000e+00> : vector<16x32xf32>
    %28 = tpu.matmul %26, %27, %cst_20 {dimension_numbers = #tpu.dot_dimension_numbers<[1], [0], [0], [1], [0, 0, 1, 1], [], []>} : vector<16x48xbf16>, vector<48x32xbf16>, vector<16x32xf32> -> vector<16x32xf32>
    %c0_21 = arith.constant 0 : index
    %c0_22 = arith.constant 0 : index
    %29 = vector.load %arg9[%c0_21, %c0_22] : memref<1x32xf32, #tpu.memory_space<vmem>>, vector<1x32xf32>
    %30 = vector.broadcast %29 : vector<1x32xf32> to vector<16x32xf32>
    %31 = arith.addf %28, %30 : vector<16x32xf32>
    %cst_23 = arith.constant 0.000000e+00 : f32
    %32 = vector.broadcast %cst_23 : f32 to vector<16x32xf32>
    %33 = arith.maximumf %31, %32 : vector<16x32xf32>
    %34 = tpu.concatenate %8, %17, %25, %33, %9 in 1 : vector<16x32xf32>, vector<16x32xf32>, vector<16x48xf32>, vector<16x32xf32>, vector<16x32xf32> -> vector<16x176xf32>
    %c0_24 = arith.constant 0 : index
    %c0_25 = arith.constant 0 : index
    %35 = vector.load %arg10[%c0_24, %c0_25] : memref<16x176xf32, #tpu.memory_space<vmem>>, vector<16x176xf32>
    tpu.vector_store %arg10[%c0_24, %c0_25], %34 {strides = array<i32>} : memref<16x176xf32, #tpu.memory_space<vmem>>, vector<16x176xf32>,
    return
  }
  func.func @transform_0(%arg0: i32) -> (i32, i32) {
    %c0_i32 = arith.constant 0 : i32
    %c0_i32_0 = arith.constant 0 : i32
    return %arg0, %c0_i32 : i32, i32
  }
  func.func @transform_1(%arg0: i32) -> (i32, i32) {
    %c0_i32 = arith.constant 0 : i32
    %c0_i32_0 = arith.constant 0 : i32
    %c0_i32_1 = arith.constant 0 : i32
    return %c0_i32, %c0_i32_0 : i32, i32
  }
  func.func @transform_2(%arg0: i32) -> (i32, i32) {
    %c0_i32 = arith.constant 0 : i32
    %c0_i32_0 = arith.constant 0 : i32
    %c0_i32_1 = arith.constant 0 : i32
    return %c0_i32, %c0_i32_0 : i32, i32
  }
  func.func @transform_3(%arg0: i32) -> (i32, i32) {
    %c0_i32 = arith.constant 0 : i32
    %c0_i32_0 = arith.constant 0 : i32
    %c0_i32_1 = arith.constant 0 : i32
    return %c0_i32, %c0_i32_0 : i32, i32
  }
  func.func @transform_4(%arg0: i32) -> (i32, i32) {
    %c0_i32 = arith.constant 0 : i32
    %c0_i32_0 = arith.constant 0 : i32
    %c0_i32_1 = arith.constant 0 : i32
    return %c0_i32, %c0_i32_0 : i32, i32
  }
  func.func @transform_5(%arg0: i32) -> (i32, i32) {
    %c0_i32 = arith.constant 0 : i32
    %c0_i32_0 = arith.constant 0 : i32
    %c0_i32_1 = arith.constant 0 : i32
    return %c0_i32, %c0_i32_0 : i32, i32
  }
  func.func @transform_6(%arg0: i32) -> (i32, i32) {
    %c0_i32 = arith.constant 0 : i32
    %c0_i32_0 = arith.constant 0 : i32
    %c0_i32_1 = arith.constant 0 : i32
    return %c0_i32, %c0_i32_0 : i32, i32
  }
  func.func @transform_7(%arg0: i32) -> (i32, i32) {
    %c0_i32 = arith.constant 0 : i32
    %c0_i32_0 = arith.constant 0 : i32
    %c0_i32_1 = arith.constant 0 : i32
    return %c0_i32, %c0_i32_0 : i32, i32
  }
  func.func @transform_8(%arg0: i32) -> (i32, i32) {
    %c0_i32 = arith.constant 0 : i32
    %c0_i32_0 = arith.constant 0 : i32
    %c0_i32_1 = arith.constant 0 : i32
    return %c0_i32, %c0_i32_0 : i32, i32
  }
  func.func @transform_9(%arg0: i32) -> (i32, i32) {
    %c0_i32 = arith.constant 0 : i32
    %c0_i32_0 = arith.constant 0 : i32
    return %arg0, %c0_i32 : i32, i32
  }
}

</mosaic_0001>

<llo_original>
// kernel: tpu_custom_call.1
$region0: #{tpu_custom_call.1}
  #allocation0 [shape = 'u32[]', space=smem, size = 0x4, offset = 0x4, fixed_abs, tag = 'smem constant byte address 0x4 - core index']
  #allocation1 [shape = 'u32[72,128]{1,0:T(1,128)}', space=vmem, size = 0x9000, scoped, tag = 'internal scratch']
  %s0 = inlined_call_operand.hbm [shape: bf16[32,64], index: 0, kind: input, shape index: {}]
  %s1 = inlined_call_operand.vmem [shape: bf16[64,64], index: 1, kind: input, shape index: {}]
  %s2 = inlined_call_operand.vmem [shape: f32[1,64], index: 2, kind: input, shape index: {}]
  %s3 = inlined_call_operand.hbm [shape: bf16[32,32], index: 3, kind: input, shape index: {}]
  %s4 = inlined_call_operand.vmem [shape: f32[1,32], index: 4, kind: input, shape index: {}]
  %s5 = inlined_call_operand.hbm [shape: bf16[32,48], index: 5, kind: input, shape index: {}]
  %s6 = inlined_call_operand.vmem [shape: f32[1,48], index: 6, kind: input, shape index: {}]
  %s7 = inlined_call_operand.vmem [shape: bf16[48,32], index: 7, kind: input, shape index: {}]
  %s8 = inlined_call_operand.vmem [shape: f32[1,32], index: 8, kind: input, shape index: {}]
  %s9 = inlined_call_operand.hbm [shape: f32[32,176], index: 9, kind: output, shape index: {}]
  %s10 = sld [smem:[#allocation0]]
  $region81: #{tpu_custom_call.1} parent=0
    _
  %s12 = ssub.s32 1, %s10
  %s13 = scalar_select 0, %s12, %s10
  $region1: #{tpu_custom_call.1} parent=0
    #allocation2 [shape = 'u8[8192]{0}', space=vmem, size = 0x2000, scoped, tag = 'input window, operand 0']
    #allocation3 [shape = 's32[2]{0}', space=sflag, size = 0x8, scoped, tag = 'scoped memory for tpu_custom_call.1']
    #allocation4 [shape = 's32[2]{0}', space=sflag, size = 0x8, scoped, tag = 'scoped memory for tpu_custom_call.1']
    #allocation5 [shape = 'u8[8192]{0}', space=vmem, size = 0x2000, scoped, tag = 'input window, operand 3, single buffered']
    #allocation6 [shape = 's32[1]{0}', space=sflag, size = 0x4, scoped, tag = 'scoped memory for tpu_custom_call.1']
    #allocation7 [shape = 'u8[8192]{0}', space=vmem, size = 0x2000, scoped, tag = 'input window, operand 5, single buffered']
    #allocation8 [shape = 'u8[32768]{0}', space=vmem, size = 0x8000, scoped, tag = 'output window, operand 0']
    %14 = vsyncpa [#allocation3], 0
    %s15 = scalar_lea.sflag [#allocation3], 1
    %16 = vsyncpa %s15, 0
    %17 = vsyncpa [#allocation6], 0
    %18 = vsyncpa [#allocation4], 0
    %s19 = scalar_lea.sflag [#allocation4], 1
    %20 = vsyncpa %s19, 0
    loop: start=0, step=1, limit=4
    $region2: #{tpu_custom_call.1} parent=1 // loop_pre_header
      _
    $region3: #{tpu_custom_call.1} parent=1 // loop_header
      %s22 = sphi 0, %s26
      %p23 = scmp.ge.s32.totalorder %s22, 4
      %s32 = sphi 0, %s34
      %s35 = sphi 0, %s32
      %s36 = sphi 0, %s35
      %s52 = sphi 0, %s36
      %s56 = sphi 0, %s56
      %s58 = sphi 0, %s56
      %s59 = sphi 0, %s58
      %s73 = sphi 0, %s59
      %s77 = sphi 0, %s77
      %s79 = sphi 0, %s77
      %s80 = sphi 0, %s79
      %s94 = sphi 0, %s80
      %s98 = sphi 0, %s98
      %s100 = sphi 0, %s98
      %s101 = sphi 0, %s100
      %s115 = sphi 0, %s101
      %s119 = sphi 0, %s119
      %s121 = sphi 0, %s119
      %s122 = sphi 0, %s121
      %s136 = sphi 0, %s122
      %s140 = sphi 0, %s140
      %s142 = sphi 0, %s140
      %s143 = sphi 0, %s142
      %s157 = sphi 0, %s143
      %s161 = sphi 0, %s161
      %s163 = sphi 0, %s161
      %s164 = sphi 0, %s163
      %s178 = sphi 0, %s164
      %s182 = sphi 0, %s182
      %s184 = sphi 0, %s182
      %s185 = sphi 0, %s184
      %s199 = sphi 0, %s185
      %s203 = sphi 0, %s203
      %s205 = sphi 0, %s203
      %s206 = sphi 0, %s205
      %s220 = sphi 0, %s206
      %s226 = sphi 0, %s228
      %s229 = sphi 0, %s226
      %s230 = sphi 0, %s229
      %s246 = sphi 0, %s230
    $region4: #{tpu_custom_call.1} parent=1 // loop_header_branch
      %25 = sbr.rel (%p23) target = $region8
    $region5: #{tpu_custom_call.1} parent=1 // loop_body
      %s27 = ssub.s32 %s22, 1
      %s28 = ssub.s32 %s22, 2
      %s29 = sadd.s32 %s22, 1
      %s30 = ssub.s32 %s22, %s29
      %p31 = scmp.eq.s32.totalorder %s30, 0
      %s33 = sadd.s32 %s32, 1
      %s34 = scalar_select %p31, %s32, %s33
      %p37 = pneg %p31
      %p38 = scmp.eq.s32.totalorder %s22, 1
      %p39 = por %p37, %p38
      %p40 = scmp.ne.s32.totalorder %s32, %s35
      %p41 = scmp.eq.s32.totalorder %s22, 0
      %p42 = por %p40, %p41
      %p43 = scmp.ne.s32.totalorder %s32, %s35
      %p44 = scmp.eq.s32.totalorder %s27, 1
      %p45 = por %p43, %p44
      %p46 = scmp.ne.s32.totalorder %s35, %s36
      %p47 = scmp.eq.s32.totalorder %s27, 0
      %p48 = por %p46, %p47
      %p49 = scmp.ne.s32.totalorder %s35, %s36
      %p50 = scmp.eq.s32.totalorder %s28, 1
      %p51 = por %p49, %p50
      %p53 = scmp.ne.s32.totalorder %s36, %s52
      %p54 = scmp.eq.s32.totalorder %s28, 0
      %p55 = por %p53, %p54
      %s57 = sadd.s32 %s56, 1
      %p60 = scmp.eq.s32.totalorder %s22, 1
      %p61 = scmp.ne.s32.totalorder %s56, %s58
      %p62 = scmp.eq.s32.totalorder %s22, 0
      %p63 = por %p61, %p62
      %p64 = scmp.ne.s32.totalorder %s56, %s58
      %p65 = scmp.eq.s32.totalorder %s27, 1
      %p66 = por %p64, %p65
      %p67 = scmp.ne.s32.totalorder %s58, %s59
      %p68 = scmp.eq.s32.totalorder %s27, 0
      %p69 = por %p67, %p68
      %p70 = scmp.ne.s32.totalorder %s58, %s59
      %p71 = scmp.eq.s32.totalorder %s28, 1
      %p72 = por %p70, %p71
      %p74 = scmp.ne.s32.totalorder %s59, %s73
      %p75 = scmp.eq.s32.totalorder %s28, 0
      %p76 = por %p74, %p75
      %s78 = sadd.s32 %s77, 1
      %p81 = scmp.eq.s32.totalorder %s22, 1
      %p82 = scmp.ne.s32.totalorder %s77, %s79
      %p83 = scmp.eq.s32.totalorder %s22, 0
      %p84 = por %p82, %p83
      %p85 = scmp.ne.s32.totalorder %s77, %s79
      %p86 = scmp.eq.s32.totalorder %s27, 1
      %p87 = por %p85, %p86
      %p88 = scmp.ne.s32.totalorder %s79, %s80
      %p89 = scmp.eq.s32.totalorder %s27, 0
      %p90 = por %p88, %p89
      %p91 = scmp.ne.s32.totalorder %s79, %s80
      %p92 = scmp.eq.s32.totalorder %s28, 1
      %p93 = por %p91, %p92
      %p95 = scmp.ne.s32.totalorder %s80, %s94
      %p96 = scmp.eq.s32.totalorder %s28, 0
      %p97 = por %p95, %p96
      %s99 = sadd.s32 %s98, 1
      %p102 = scmp.eq.s32.totalorder %s22, 1
      %p103 = scmp.ne.s32.totalorder %s98, %s100
      %p104 = scmp.eq.s32.totalorder %s22, 0
      %p105 = por %p103, %p104
      %p106 = scmp.ne.s32.totalorder %s98, %s100
      %p107 = scmp.eq.s32.totalorder %s27, 1
      %p108 = por %p106, %p107
      %p109 = scmp.ne.s32.totalorder %s100, %s101
      %p110 = scmp.eq.s32.totalorder %s27, 0
      %p111 = por %p109, %p110
      %p112 = scmp.ne.s32.totalorder %s100, %s101
      %p113 = scmp.eq.s32.totalorder %s28, 1
      %p114 = por %p112, %p113
      %p116 = scmp.ne.s32.totalorder %s101, %s115
      %p117 = scmp.eq.s32.totalorder %s28, 0
      %p118 = por %p116, %p117
      %s120 = sadd.s32 %s119, 1
      %p123 = scmp.eq.s32.totalorder %s22, 1
      %p124 = scmp.ne.s32.totalorder %s119, %s121
      %p125 = scmp.eq.s32.totalorder %s22, 0
      %p126 = por %p124, %p125
      %p127 = scmp.ne.s32.totalorder %s119, %s121
      %p128 = scmp.eq.s32.totalorder %s27, 1
      %p129 = por %p127, %p128
      %p130 = scmp.ne.s32.totalorder %s121, %s122
      %p131 = scmp.eq.s32.totalorder %s27, 0
      %p132 = por %p130, %p131
      %p133 = scmp.ne.s32.totalorder %s121, %s122
      %p134 = scmp.eq.s32.totalorder %s28, 1
      %p135 = por %p133, %p134
      %p137 = scmp.ne.s32.totalorder %s122, %s136
      %p138 = scmp.eq.s32.totalorder %s28, 0
      %p139 = por %p137, %p138
      %s141 = sadd.s32 %s140, 1
      %p144 = scmp.eq.s32.totalorder %s22, 1
      %p145 = scmp.ne.s32.totalorder %s140, %s142
      %p146 = scmp.eq.s32.totalorder %s22, 0
      %p147 = por %p145, %p146
      %p148 = scmp.ne.s32.totalorder %s140, %s142
      %p149 = scmp.eq.s32.totalorder %s27, 1
      %p150 = por %p148, %p149
      %p151 = scmp.ne.s32.totalorder %s142, %s143
      %p152 = scmp.eq.s32.totalorder %s27, 0
      %p153 = por %p151, %p152
      %p154 = scmp.ne.s32.totalorder %s142, %s143
      %p155 = scmp.eq.s32.totalorder %s28, 1
      %p156 = por %p154, %p155
      %p158 = scmp.ne.s32.totalorder %s143, %s157
      %p159 = scmp.eq.s32.totalorder %s28, 0
      %p160 = por %p158, %p159
      %s162 = sadd.s32 %s161, 1
      %p165 = scmp.eq.s32.totalorder %s22, 1
      %p166 = scmp.ne.s32.totalorder %s161, %s163
      %p167 = scmp.eq.s32.totalorder %s22, 0
      %p168 = por %p166, %p167
      %p169 = scmp.ne.s32.totalorder %s161, %s163
      %p170 = scmp.eq.s32.totalorder %s27, 1
      %p171 = por %p169, %p170
      %p172 = scmp.ne.s32.totalorder %s163, %s164
      %p173 = scmp.eq.s32.totalorder %s27, 0
      %p174 = por %p172, %p173
      %p175 = scmp.ne.s32.totalorder %s163, %s164
      %p176 = scmp.eq.s32.totalorder %s28, 1
      %p177 = por %p175, %p176
      %p179 = scmp.ne.s32.totalorder %s164, %s178
      %p180 = scmp.eq.s32.totalorder %s28, 0
      %p181 = por %p179, %p180
      %s183 = sadd.s32 %s182, 1
      %p186 = scmp.eq.s32.totalorder %s22, 1
      %p187 = scmp.ne.s32.totalorder %s182, %s184
      %p188 = scmp.eq.s32.totalorder %s22, 0
      %p189 = por %p187, %p188
      %p190 = scmp.ne.s32.totalorder %s182, %s184
      %p191 = scmp.eq.s32.totalorder %s27, 1
      %p192 = por %p190, %p191
      %p193 = scmp.ne.s32.totalorder %s184, %s185
      %p194 = scmp.eq.s32.totalorder %s27, 0
      %p195 = por %p193, %p194
      %p196 = scmp.ne.s32.totalorder %s184, %s185
      %p197 = scmp.eq.s32.totalorder %s28, 1
      %p198 = por %p196, %p197
      %p200 = scmp.ne.s32.totalorder %s185, %s199
      %p201 = scmp.eq.s32.totalorder %s28, 0
      %p202 = por %p200, %p201
      %s204 = sadd.s32 %s203, 1
      %p207 = scmp.eq.s32.totalorder %s22, 1
      %p208 = scmp.ne.s32.totalorder %s203, %s205
      %p209 = scmp.eq.s32.totalorder %s22, 0
      %p210 = por %p208, %p209
      %p211 = scmp.ne.s32.totalorder %s203, %s205
      %p212 = scmp.eq.s32.totalorder %s27, 1
      %p213 = por %p211, %p212
      %p214 = scmp.ne.s32.totalorder %s205, %s206
      %p215 = scmp.eq.s32.totalorder %s27, 0
      %p216 = por %p214, %p215
      %p217 = scmp.ne.s32.totalorder %s205, %s206
      %p218 = scmp.eq.s32.totalorder %s28, 1
      %p219 = por %p217, %p218
      %p221 = scmp.ne.s32.totalorder %s206, %s220
      %p222 = scmp.eq.s32.totalorder %s28, 0
      %p223 = por %p221, %p222
      %s224 = ssub.s32 %s22, %s29
      %p225 = scmp.eq.s32.totalorder %s224, 0
      %s227 = sadd.s32 %s226, 1
      %s228 = scalar_select %p225, %s226, %s227
      %p231 = pneg %p225
      %p232 = scmp.eq.s32.totalorder %s22, 1
      %p233 = por %p231, %p232
      %p234 = scmp.ne.s32.totalorder %s226, %s229
      %p235 = scmp.eq.s32.totalorder %s22, 0
      %p236 = por %p234, %p235
      %p237 = scmp.ne.s32.totalorder %s226, %s229
      %p238 = scmp.eq.s32.totalorder %s27, 1
      %p239 = por %p237, %p238
      %p240 = scmp.ne.s32.totalorder %s229, %s230
      %p241 = scmp.eq.s32.totalorder %s27, 0
      %p242 = por %p240, %p241
      %p243 = scmp.ne.s32.totalorder %s229, %s230
      %p244 = scmp.eq.s32.totalorder %s28, 1
      %p245 = por %p243, %p244
      %p247 = scmp.ne.s32.totalorder %s230, %s246
      %p248 = scmp.eq.s32.totalorder %s28, 0
      %p249 = por %p247, %p248
      %p250 = scmp.le.s32.totalorder 1, %s22
      %p251 = scmp.lt.s32.totalorder %s22, 3
      %p252 = pnand %p250, %p251
      %p253 = pneg %p252
      // Predicated region
      $region9: #{tpu_custom_call.1} parent=5 // pred_check
        _
      $region10: #{tpu_custom_call.1} parent=5 // pred_check_branch
        %255 = sbr.rel (%p252) target = $region12
      $region11: #{tpu_custom_call.1} parent=5 // pred_region
        %s256 = ssub.s32 %s22, 1
        // Predicated region
        $region13: #{tpu_custom_call.1} parent=11 // pred_check
          %p257 = pneg %p69
        $region14: #{tpu_custom_call.1} parent=11 // pred_check_branch
          %259 = sbr.rel (%p257) target = $region16
        $region15: #{tpu_custom_call.1} parent=11 // pred_region
          _
        $region16: #{tpu_custom_call.1} parent=11 // pred_fallthru
          _
        // Predicated region
        $region17: #{tpu_custom_call.1} parent=11 // pred_check
          %p260 = pneg %p90
        $region18: #{tpu_custom_call.1} parent=11 // pred_check_branch
          %262 = sbr.rel (%p260) target = $region20
        $region19: #{tpu_custom_call.1} parent=11 // pred_region
          _
        $region20: #{tpu_custom_call.1} parent=11 // pred_fallthru
          _
        // Predicated region
        $region21: #{tpu_custom_call.1} parent=11 // pred_check
          %p263 = pneg %p111
        $region22: #{tpu_custom_call.1} parent=11 // pred_check_branch
          %265 = sbr.rel (%p263) target = $region24
        $region23: #{tpu_custom_call.1} parent=11 // pred_region
          %267 = vsyncadd [#allocation6], 0
          %s268 = sshll.u32 %s3, 4
          %s269 = int_to_ptr.hbm [resolvable:$true] %s268
          %s270 = sshll.u32 [#allocation5], 4
          %s271 = int_to_ptr.vmem [resolvable:$true] %s270
          %276 = dma.hbm_to_vmem [thread:$0]  %s269, 256, %s271, [#allocation6], 64, 64, 4
        $region24: #{tpu_custom_call.1} parent=11 // pred_fallthru
          _
        // Predicated region
        $region25: #{tpu_custom_call.1} parent=11 // pred_check
          %p277 = pneg %p132
        $region26: #{tpu_custom_call.1} parent=11 // pred_check_branch
          %279 = sbr.rel (%p277) target = $region28
        $region27: #{tpu_custom_call.1} parent=11 // pred_region
          _
        $region28: #{tpu_custom_call.1} parent=11 // pred_fallthru
          _
        // Predicated region
        $region29: #{tpu_custom_call.1} parent=11 // pred_check
          %p280 = pneg %p153
        $region30: #{tpu_custom_call.1} parent=11 // pred_check_branch
          %282 = sbr.rel (%p280) target = $region32
        $region31: #{tpu_custom_call.1} parent=11 // pred_region
          %284 = vsyncadd [#allocation6], 0
          %s285 = sshll.u32 %s5, 4
          %s286 = int_to_ptr.hbm [resolvable:$true] %s285
          %s287 = sshll.u32 [#allocation7], 4
          %s288 = int_to_ptr.vmem [resolvable:$true] %s287
          %293 = dma.hbm_to_vmem [thread:$0]  %s286, 256, %s288, [#allocation6], 64, 64, 4
        $region32: #{tpu_custom_call.1} parent=11 // pred_fallthru
          _
        // Predicated region
        $region33: #{tpu_custom_call.1} parent=11 // pred_check
          %p294 = pneg %p174
        $region34: #{tpu_custom_call.1} parent=11 // pred_check_branch
          %296 = sbr.rel (%p294) target = $region36
        $region35: #{tpu_custom_call.1} parent=11 // pred_region
          _
        $region36: #{tpu_custom_call.1} parent=11 // pred_fallthru
          _
        // Predicated region
        $region37: #{tpu_custom_call.1} parent=11 // pred_check
          %p297 = pneg %p195
        $region38: #{tpu_custom_call.1} parent=11 // pred_check_branch
          %299 = sbr.rel (%p297) target = $region40
        $region39: #{tpu_custom_call.1} parent=11 // pred_region
          _
        $region40: #{tpu_custom_call.1} parent=11 // pred_fallthru
          _
        // Predicated region
        $region41: #{tpu_custom_call.1} parent=11 // pred_check
          %p300 = pneg %p216
        $region42: #{tpu_custom_call.1} parent=11 // pred_check_branch
          %302 = sbr.rel (%p300) target = $region44
        $region43: #{tpu_custom_call.1} parent=11 // pred_region
          _
        $region44: #{tpu_custom_call.1} parent=11 // pred_fallthru
          _
      $region12: #{tpu_custom_call.1} parent=5 // pred_fallthru
        _
      %p303 = scmp.lt.s32.totalorder %s22, 2
      // Predicated region
      $region45: #{tpu_custom_call.1} parent=5 // pred_check
        %p304 = pneg %p303
      $region46: #{tpu_custom_call.1} parent=5 // pred_check_branch
        %306 = sbr.rel (%p304) target = $region48
      $region47: #{tpu_custom_call.1} parent=5 // pred_region
        // Predicated region
        $region49: #{tpu_custom_call.1} parent=47 // pred_check
          %p307 = pneg %p42
        $region50: #{tpu_custom_call.1} parent=47 // pred_check_branch
          %309 = sbr.rel (%p307) target = $region52
        $region51: #{tpu_custom_call.1} parent=47 // pred_region
          %s310 = sand.u32 %s32, 1
          %s311 = scalar_lea.sflag [#allocation3], %s310
          %s312 = sand.u32 %s32, 1
          %s313 = smul.addr %s312, 8
          %s314 = scalar_lea.vmem [#allocation2], %s313
          %s315 = smul.u32 2, %s22
          %317 = vsyncadd %s311, 0
          %s318 = smul.addr %s315, 4
          %s319 = scalar_lea.hbm %s0, %s318
          %s320 = sshll.u32 %s319, 4
          %s321 = int_to_ptr.hbm [resolvable:$true] %s320
          %s322 = sshll.u32 %s314, 4
          %s323 = int_to_ptr.vmem [resolvable:$true] %s322
          %328 = dma.hbm_to_vmem [thread:$0]  %s321, 128, %s323, %s311, 64, 64, 4
        $region52: #{tpu_custom_call.1} parent=47 // pred_fallthru
          _
      $region48: #{tpu_custom_call.1} parent=5 // pred_fallthru
        _
      %p329 = scmp.le.s32.totalorder 1, %s22
      %p330 = scmp.lt.s32.totalorder %s22, 3
      %p331 = pnand %p329, %p330
      %p332 = pneg %p331
      // Predicated region
      $region53: #{tpu_custom_call.1} parent=5 // pred_check
        _
      $region54: #{tpu_custom_call.1} parent=5 // pred_check_branch
        %334 = sbr.rel (%p331) target = $region56
      $region55: #{tpu_custom_call.1} parent=5 // pred_region
        %s335 = ssub.s32 %s22, 1
        %s336 = sand.u32 %s35, 1
        %s337 = scalar_lea.sflag [#allocation3], %s336
        %s338 = sand.u32 %s35, 1
        %s339 = smul.addr %s338, 8
        %s340 = scalar_lea.vmem [#allocation2], %s339
        // Predicated region
        $region57: #{tpu_custom_call.1} parent=55 // pred_check
          %p341 = pneg %p48
        $region58: #{tpu_custom_call.1} parent=55 // pred_check_branch
          %343 = sbr.rel (%p341) target = $region60
        $region59: #{tpu_custom_call.1} parent=55 // pred_region
          %345 = dma.done %s337, 128
        $region60: #{tpu_custom_call.1} parent=55 // pred_fallthru
          _
        // Predicated region
        $region61: #{tpu_custom_call.1} parent=55 // pred_check
          %p346 = pneg %p111
        $region62: #{tpu_custom_call.1} parent=55 // pred_check_branch
          %348 = sbr.rel (%p346) target = $region64
        $region63: #{tpu_custom_call.1} parent=55 // pred_region
          %350 = dma.done [#allocation6], 256
        $region64: #{tpu_custom_call.1} parent=55 // pred_fallthru
          _
        // Predicated region
        $region65: #{tpu_custom_call.1} parent=55 // pred_check
          %p351 = pneg %p153
        $region66: #{tpu_custom_call.1} parent=55 // pred_check_branch
          %353 = sbr.rel (%p351) target = $region68
        $region67: #{tpu_custom_call.1} parent=55 // pred_region
          %355 = dma.done [#allocation6], 256
        $region68: #{tpu_custom_call.1} parent=55 // pred_fallthru
          _
        %s356 = sand.u32 %s35, 1
        %s357 = scalar_lea.sflag [#allocation3], %s356
        %s358 = sand.u32 %s35, 1
        %s359 = smul.addr %s358, 8
        %s360 = scalar_lea.vmem [#allocation2], %s359
        %p361 = pneg %p48
        %p362 = pneg %p45
        %p363 = pneg %p69
        %p364 = pneg %p66
        %p365 = pneg %p90
        %p366 = pneg %p87
        %p367 = pneg %p111
        %p368 = pneg %p108
        %p369 = pneg %p132
        %p370 = pneg %p129
        %p371 = pneg %p153
        %p372 = pneg %p150
        %p373 = pneg %p174
        %p374 = pneg %p171
        %p375 = pneg %p195
        %p376 = pneg %p192
        %p377 = pneg %p216
        %p378 = pneg %p213
        %p379 = pneg %p242
        %p380 = pneg %p239
        %s381 = sand.u32 %s229, 1
        %s382 = scalar_lea.sflag [#allocation4], %s381
        %s383 = sand.u32 %s229, 1
        %s384 = smul.addr %s383, 32
        %s385 = scalar_lea.vmem [#allocation8], %s384
        %s386 = smul.u32 2, %s27
        %s387 = smul.u32 2, %s27
        %v389 = vld [vmem:[%s340] sm:$0xf]
        %v390 = vld [vmem:[%s340 + $0x4] sm:$0xf]
        %v391 = vld [vmem:[%s1] sm:$0xf]
        %v392 = vld [vmem:[%s1 + $0x4] sm:$0xf]
        %v393 = vld [vmem:[%s1 + $0x8] sm:$0xf]
        %v394 = vld [vmem:[%s1 + $0xc] sm:$0xf]
        %v395 = vld [vmem:[%s1 + $0x10] sm:$0xf]
        %v396 = vld [vmem:[%s1 + $0x14] sm:$0xf]
        %v397 = vld [vmem:[%s1 + $0x18] sm:$0xf]
        %v398 = vld [vmem:[%s1 + $0x1c] sm:$0xf]
        %v399 = vld [vmem:[%s2] sm:$0x1]
        %v401 = vperm.slane %v399, 0
        %v405 = vunpack.c.l.b16 %v389
        %v406 = vunpack.c.l.b16 %v390
        %v407 = vpack.c.b16 %v406, %v405
        %v416 = vunpack.c.l.b16 %v391
        %v417 = vunpack.c.l.b16 %v392
        %v418 = vunpack.c.l.b16 %v393
        %v419 = vunpack.c.l.b16 %v394
        %v420 = vunpack.c.l.b16 %v395
        %v421 = vunpack.c.l.b16 %v396
        %v422 = vunpack.c.l.b16 %v397
        %v423 = vunpack.c.l.b16 %v398
        %v424 = vpack.c.b16 %v417, %v416
        %v425 = vpack.c.b16 %v419, %v418
        %v426 = vpack.c.b16 %v421, %v420
        %v427 = vpack.c.b16 %v423, %v422
        %vm432 = vcmask 523264
        %v434 = vsel %vm432, %v407, 0
        %436 = vmatpush.bf16.msra.mxu0 0
        %437 = vmatpush.bf16.msra.mxu0 0
        %438 = vmatpush.bf16.msra.mxu0 0
        %439 = vmatpush.bf16.msra.mxu0 0
        %440 = vmatpush.bf16.msra.mxu0 %v427
        %441 = vmatpush.bf16.msra.mxu0 %v426
        %442 = vmatpush.bf16.msra.mxu0 %v425
        %443 = vmatpush.bf16.msra.mxu0 %v424
        %444 = vmatmul.bf16.gmra.mxu0 %v434
        %v445 = vpop.f32.mrf.mxu0
        %v446 = vadd.f32 %v401, %v445
        %v447 = vpop.f32.mrf.mxu0
        %v448 = vadd.f32 %v401, %v447
        %449 = vdwg.mxu0
        %v450 = vmax.f32 %v446, 0.0
        %v451 = vmax.f32 %v448, 0.0
        %v452 = vpack.c.bf16 %v451, %v450
        %v453 = vld [vmem:[#allocation5] sm:$0xf]
        %v454 = vld [vmem:[#allocation5 + $0x4] sm:$0xf]
        %v455 = vld [vmem:[#allocation5 + $0x8] sm:$0xf]
        %v456 = vld [vmem:[#allocation5 + $0xc] sm:$0xf]
        %v457 = vld [vmem:[%s4] sm:$0x1]
        %v459 = vperm.slane %v457, 0
        %v465 = vunpack.c.l.b16 %v453
        %v466 = vunpack.c.l.b16 %v454
        %v467 = vunpack.c.l.b16 %v455
        %v468 = vunpack.c.l.b16 %v456
        %v469 = vpack.c.b16 %v466, %v465
        %v470 = vpack.c.b16 %v468, %v467
        %vm473 = vcmask 261120
        %v475 = vsel %vm473, %v452, 0
        %477 = vmatpush.bf16.msra.mxu0 0
        %478 = vmatpush.bf16.msra.mxu0 0
        %479 = vmatpush.bf16.msra.mxu0 0
        %480 = vmatpush.bf16.msra.mxu0 0
        %481 = vmatpush.bf16.msra.mxu0 0
        %482 = vmatpush.bf16.msra.mxu0 0
        %483 = vmatpush.bf16.msra.mxu0 %v470
        %484 = vmatpush.bf16.msra.mxu0 %v469
        %485 = vmatmul.bf16.gmra.mxu0 %v475
        %v486 = vpop.f32.mrf.mxu0
        %v487 = vadd.f32 %v459, %v486
        %v488 = vpop.f32.mrf.mxu0
        %v489 = vadd.f32 %v459, %v488
        %490 = vdwg.mxu0
        %v491 = vmax.f32 %v487, 0.0
        %v492 = vmax.f32 %v489, 0.0
        %v493 = vpack.c.bf16 %v492, %v491
        %v494 = vld [vmem:[#allocation7] sm:$0xf]
        %v495 = vld [vmem:[#allocation7 + $0x4] sm:$0xf]
        %v496 = vld [vmem:[#allocation7 + $0x8] sm:$0xf]
        %v497 = vld [vmem:[#allocation7 + $0xc] sm:$0xf]
        %v498 = vld [vmem:[%s6] sm:$0x1]
        %v500 = vperm.slane %v498, 0
        %v506 = vunpack.c.l.b16 %v494
        %v507 = vunpack.c.l.b16 %v495
        %v508 = vunpack.c.l.b16 %v496
        %v509 = vunpack.c.l.b16 %v497
        %v510 = vpack.c.b16 %v507, %v506
        %v511 = vpack.c.b16 %v509, %v508
        %v515 = vsel %vm473, %v493, 0
        %517 = vmatpush.bf16.msra.mxu0 0
        %518 = vmatpush.bf16.msra.mxu0 0
        %519 = vmatpush.bf16.msra.mxu0 0
        %520 = vmatpush.bf16.msra.mxu0 0
        %521 = vmatpush.bf16.msra.mxu0 0
        %522 = vmatpush.bf16.msra.mxu0 0
        %523 = vmatpush.bf16.msra.mxu0 %v511
        %524 = vmatpush.bf16.msra.mxu0 %v510
        %525 = vmatmul.bf16.gmra.mxu0 %v515
        %v526 = vpop.f32.mrf.mxu0
        %v527 = vadd.f32 %v500, %v526
        %v528 = vpop.f32.mrf.mxu0
        %v529 = vadd.f32 %v500, %v528
        %530 = vdwg.mxu0
        %v531 = vmax.f32 %v527, 0.0
        %v532 = vmax.f32 %v529, 0.0
        %v533 = vpack.c.bf16 %v532, %v531
        %v534 = vld [vmem:[%s7] sm:$0xf]
        %v535 = vld [vmem:[%s7 + $0x4] sm:$0xf]
        %v536 = vld [vmem:[%s7 + $0x8] sm:$0xf]
        %v537 = vld [vmem:[%s7 + $0xc] sm:$0xf]
        %v538 = vld [vmem:[%s7 + $0x10] sm:$0xf]
        %v539 = vld [vmem:[%s7 + $0x14] sm:$0xf]
        %v540 = vld [vmem:[%s8] sm:$0x1]
        %v542 = vperm.slane %v540, 0
        %v550 = vunpack.c.l.b16 %v534
        %v551 = vunpack.c.l.b16 %v535
        %v552 = vunpack.c.l.b16 %v536
        %v553 = vunpack.c.l.b16 %v537
        %v554 = vunpack.c.l.b16 %v538
        %v555 = vunpack.c.l.b16 %v539
        %v556 = vpack.c.b16 %v551, %v550
        %v557 = vpack.c.b16 %v553, %v552
        %v558 = vpack.c.b16 %v555, %v554
        %vm562 = vcmask 392192
        %v564 = vsel %vm562, %v533, 0
        %566 = vmatpush.bf16.msra.mxu0 0
        %567 = vmatpush.bf16.msra.mxu0 0
        %568 = vmatpush.bf16.msra.mxu0 0
        %569 = vmatpush.bf16.msra.mxu0 0
        %570 = vmatpush.bf16.msra.mxu0 0
        %571 = vmatpush.bf16.msra.mxu0 %v558
        %572 = vmatpush.bf16.msra.mxu0 %v557
        %573 = vmatpush.bf16.msra.mxu0 %v556
        %574 = vmatmul.bf16.gmra.mxu0 %v564
        %v575 = vpop.f32.mrf.mxu0
        %v576 = vadd.f32 %v542, %v575
        %v577 = vpop.f32.mrf.mxu0
        %v578 = vadd.f32 %v542, %v577
        %579 = vdwg.mxu0
        %v580 = vmax.f32 %v576, 0.0
        %v581 = vmax.f32 %v578, 0.0
        %584 = vrot.lane.b32.xlu0 %v491, 32
        %v585 = vpop.permute.xlu0 %584
        %586 = vrot.lane.b32.xlu0 %v492, 32
        %v587 = vpop.permute.xlu0 %586
        %592 = vrot.lane.b32.xlu0 %v531, 64
        %v593 = vpop.permute.xlu0 %592
        %594 = vrot.lane.b32.xlu0 %v532, 64
        %v595 = vpop.permute.xlu0 %594
        %600 = vrot.lane.b32.xlu0 %v580, 112
        %v601 = vpop.permute.xlu0 %600
        %602 = vrot.lane.b32.xlu0 %v581, 112
        %v603 = vpop.permute.xlu0 %602
        %608 = vrot.lane.b32.xlu0 %v450, 112
        %v609 = vpop.permute.xlu0 %608
        %610 = vrot.lane.b32.xlu0 %v451, 112
        %v611 = vpop.permute.xlu0 %610
        %v614 = vsel %vm473, %v450, %v585
        %v615 = vsel %vm473, %v451, %v587
        %v616 = vsel %vm432, %v614, %v593
        %v617 = vsel %vm432, %v615, %v595
        %vm618 = vcmask 916480
        %v619 = vsel %vm618, %v616, %v601
        %v620 = vsel %vm618, %v617, %v603
        %vm621 = vcmask 130048
        %v622 = vsel %vm621, %v601, %v609
        %v623 = vsel %vm621, %v603, %v611
        %624 = vst [vmem:[%s385] sm:$0xff] %v619
        %625 = vst.msk [vmem:[%s385 + $0x8] sm:$0xff] %vm562, %v622
        %626 = vst [vmem:[%s385 + $0x10] sm:$0xff] %v620
        %627 = vst.msk [vmem:[%s385 + $0x18] sm:$0xff] %vm562, %v623
        %s628 = sand.u32 %s229, 1
        %s629 = scalar_lea.sflag [#allocation4], %s628
        %s630 = sand.u32 %s229, 1
        %s631 = smul.addr %s630, 32
        %s632 = scalar_lea.vmem [#allocation8], %s631
        // Predicated region
        $region69: #{tpu_custom_call.1} parent=55 // pred_check
          %p633 = pneg %p239
        $region70: #{tpu_custom_call.1} parent=55 // pred_check_branch
          %635 = sbr.rel (%p633) target = $region72
        $region71: #{tpu_custom_call.1} parent=55 // pred_region
          %s636 = smul.u32 2, %s27
          %638 = vsyncadd %s629, 0
          %s639 = smul.addr %s636, 2
          %s640 = smul.addr %s639, 8
          %s641 = scalar_lea.hbm %s9, %s640
          %s642 = sshll.u32 %s632, 4
          %s643 = int_to_ptr.vmem [resolvable:$true] %s642
          %s644 = sshll.u32 %s641, 4
          %s645 = int_to_ptr.hbm [resolvable:$true] %s644
          %650 = dma.vmem_to_hbm [thread:$0]  %s643, 512, %s645, %s629, 256, 256, 16
        $region72: #{tpu_custom_call.1} parent=55 // pred_fallthru
          _
      $region56: #{tpu_custom_call.1} parent=5 // pred_fallthru
        _
      %p651 = scmp.le.s32.totalorder 2, %s22
      // Predicated region
      $region73: #{tpu_custom_call.1} parent=5 // pred_check
        %p652 = pneg %p651
      $region74: #{tpu_custom_call.1} parent=5 // pred_check_branch
        %654 = sbr.rel (%p652) target = $region76
      $region75: #{tpu_custom_call.1} parent=5 // pred_region
        %s655 = ssub.s32 %s22, 2
        // Predicated region
        $region77: #{tpu_custom_call.1} parent=75 // pred_check
          %p656 = pneg %p245
        $region78: #{tpu_custom_call.1} parent=75 // pred_check_branch
          %658 = sbr.rel (%p656) target = $region80
        $region79: #{tpu_custom_call.1} parent=75 // pred_region
          %s659 = sand.u32 %s230, 1
          %s660 = scalar_lea.sflag [#allocation4], %s659
          %s661 = sand.u32 %s230, 1
          %s662 = smul.addr %s661, 32
          %s663 = scalar_lea.vmem [#allocation8], %s662
          %665 = dma.done %s660, 512
        $region80: #{tpu_custom_call.1} parent=75 // pred_fallthru
          _
      $region76: #{tpu_custom_call.1} parent=5 // pred_fallthru
        _
    $region6: #{tpu_custom_call.1} parent=1 // loop_footer
      %s26 = sadd.s32 1, %s22
    $region7: #{tpu_custom_call.1} parent=1 // loop_footer_branch
      %21 = sbr.rel target = $region3
    $region8: #{tpu_custom_call.1} parent=1 // loop_exit
      _
    %666 = vsyncpa [#allocation3], 1
    %s667 = scalar_lea.sflag [#allocation3], 1
    %668 = vsyncpa %s667, 1
    %669 = vsyncpa [#allocation6], 1
    %670 = vsyncpa [#allocation4], 1
    %s671 = scalar_lea.sflag [#allocation4], 1
    %672 = vsyncpa %s671, 1

</llo_original>
